<compile_context>
chip_gen: v7x
topology: tpu7x:2x2x1
jax: 0.10.0
libtpu: 0.0.40
codegen_flags: <defaults>
</compile_context>

<pallas_src>
import jax
import jax.numpy as jnp
from jax.experimental import pallas as pl
from jax.experimental.pallas import tpu as pltpu

_LANES = 128


def _dice_ce_kernel(w_ref, x_ref, t_ref, out_ref, num_acc, den_acc, t_acc):
    """Grid = (batch, spatial_tiles).

    w_ref  : (2,)            f32 SMEM  CE class weights [w0, w1]
    x_ref  : (1, 2, TR, 128) logits tile (native dtype), channels 0/1
    t_ref  : (1, TR, 128)    i32 target class indices (-1 = padding / ignore)
    out_ref: (1, 3, 128)     f32 per-batch per-lane partials:
                             row0 = sum(w[t]*nll), row1 = sum(w[t]), row2 = sum(t)
    num_acc/den_acc/t_acc : (TR, 128) f32 VMEM scratch carried across the
                            spatial axis, reset at the first spatial tile.
    """
    s = pl.program_id(1)

    @pl.when(s == 0)
    def _init():
        num_acc[...] = jnp.zeros_like(num_acc)
        den_acc[...] = jnp.zeros_like(den_acc)
        t_acc[...] = jnp.zeros_like(t_acc)

    x0 = x_ref[0, 0].astype(jnp.float32)          # (TR, 128)
    x1 = x_ref[0, 1].astype(jnp.float32)
    t = t_ref[0]                                  # (TR, 128) int32

    # softmax over the two channels: p1 - p0 = tanh((x1 - x0)/2)
    d = jnp.tanh((x1 - x0) * 0.5)
    # CE applied to the probabilities themselves:
    #   lse    = log(exp(p0) + exp(p1)) = p0 + log(1 + exp(d))
    #   nll(t) = lse - p_t = log(1 + exp(d)) - [t==1]*d
    # d in (-1, 1), so exp(d) cannot overflow: no max-subtraction needed.
    sp = jnp.log(1.0 + jnp.exp(d))
    is1 = (t == 1).astype(jnp.float32)
    is0 = (t == 0).astype(jnp.float32)
    wt = w_ref[0] * is0 + w_ref[1] * is1          # 0 for out-of-range targets

    num_acc[...] += wt * (sp - is1 * d)
    den_acc[...] += wt
    t_acc[...] += t.astype(jnp.float32)           # exact: |t| small per elem

    @pl.when(s == pl.num_programs(1) - 1)
    def _emit():
        out_ref[0, 0:1, :] = jnp.sum(num_acc[...], axis=0, keepdims=True)
        out_ref[0, 1:2, :] = jnp.sum(den_acc[...], axis=0, keepdims=True)
        out_ref[0, 2:3, :] = jnp.sum(t_acc[...], axis=0, keepdims=True)


def _pick_tile_rows(rows, cap=2048):
    """Spatial tile height: multiple of 8, padding waste kept <= ~20%."""
    rows8 = -(-rows // 8) * 8
    tr = min(cap, rows8)
    while tr > 8:
        padded = -(-rows // tr) * tr
        if (padded - rows) / padded <= 0.2:
            break
        tr = max(8, (tr // 2) // 8 * 8)
    return max(8, tr)


def dice_loss_forward(x, target, class_weights):
    """Matches DiceLoss.forward(input, target) -> (loss, num_selected)."""
    N, C, H, W = x.shape
    assert C == 2, "kernel is specialized for 2 classes (CE weight [1, 40])"
    S = H * W
    rows = -(-S // _LANES)
    tr = _pick_tile_rows(rows)
    rows_p = -(-rows // tr) * tr
    n_spatial = rows_p // tr
    pad = rows_p * _LANES - S

    # Keep logits in their native dtype (cast in-kernel).  Pad targets with -1
    # (weight 0 -> zero loss contribution); the -1 padding is compensated when
    # evaluating the selection predicate below.
    x_r = x.reshape(N, C, S)
    t_r = target.reshape(N, S).astype(jnp.int32)
    if pad:
        x_r = jnp.pad(x_r, ((0, 0), (0, 0), (0, pad)))
        t_r = jnp.pad(t_r, ((0, 0), (0, pad)), constant_values=-1)
    x_r = x_r.reshape(N, C, rows_p, _LANES)
    t_r = t_r.reshape(N, rows_p, _LANES)
    w_r = class_weights.reshape(2).astype(jnp.float32)

    out = pl.pallas_call(
        _dice_ce_kernel,
        out_shape=jax.ShapeDtypeStruct((N, 3, _LANES), jnp.float32),
        grid_spec=pltpu.PrefetchScalarGridSpec(
            num_scalar_prefetch=0,
            grid=(N, n_spatial),
            in_specs=[
                pl.BlockSpec(memory_space=pltpu.MemorySpace.SMEM),
                pl.BlockSpec((1, 2, tr, _LANES), lambda n, s: (n, 0, s, 0)),
                pl.BlockSpec((1, tr, _LANES), lambda n, s: (n, s, 0)),
            ],
            out_specs=pl.BlockSpec((1, 3, _LANES), lambda n, s: (n, 0, 0)),
            scratch_shapes=[
                pltpu.VMEM((tr, _LANES), jnp.float32),
                pltpu.VMEM((tr, _LANES), jnp.float32),
                pltpu.VMEM((tr, _LANES), jnp.float32),
            ],
        ),
        compiler_params=pltpu.CompilerParams(
            dimension_semantics=("parallel", "arbitrary"),
            vmem_limit_bytes=32 * 1024 * 1024,
        ),
    )(w_r, x_r, t_r)

    num_b = jnp.sum(out[:, 0, :], axis=-1)                     # (N,)
    den_b = jnp.sum(out[:, 1, :], axis=-1)
    # Selection predicate target[i].sum() >= 0; compensate the -1 padding.
    # (f32 partials stay exact for |sum| < 2^24, i.e. any realistic H*W.)
    tsum_b = jnp.sum(out[:, 2, :], axis=-1) + jnp.float32(pad)
    sel = (tsum_b >= 0).astype(jnp.float32)
    num = jnp.sum(sel * num_b)
    den = jnp.sum(sel * den_b)
    cnt = jnp.sum(sel)
    # TODO(synk): torch returns a Python int count and a structurally different
    # value when nothing is selected; JAX can't branch on data, so mask instead.
    loss = jnp.where(cnt > 0, num / den, jnp.float32(0.0))
    return loss, cnt.astype(jnp.int32)


def dice_loss_ref(x, target, class_weights):
    """Pure-JAX reference mirroring the PyTorch semantics."""
    N, C = x.shape[0], x.shape[1]
    p = jax.nn.softmax(x.astype(jnp.float32), axis=1)
    logq = jax.nn.log_softmax(p, axis=1)
    sel = target.reshape(N, -1).sum(axis=1) >= 0
    onehot = jax.nn.one_hot(target, C, axis=1, dtype=jnp.float32)   # (N,C,H,W)
    w = class_weights.astype(jnp.float32).reshape(1, C, 1, 1)
    wt = (onehot * w).sum(axis=1)                                   # (N,H,W)
    nll = -(onehot * logq).sum(axis=1)                              # (N,H,W)
    selm = sel.astype(jnp.float32)[:, None, None]
    num = (selm * wt * nll).sum()
    den = (selm * wt).sum()
    cnt = sel.sum()
    loss = jnp.where(cnt > 0, num / den, jnp.float32(0.0))
    return loss, cnt.astype(jnp.int32)


if __name__ == "__main__":
    key = jax.random.PRNGKey(0)
    kx, kt = jax.random.split(key)
    N, C, H, W = 4, 2, 16, 16      # 2 classes, dictated by CE weight [1, 40]
    x = jax.random.normal(kx, (N, C, H, W), dtype=jnp.float32)
    target = jax.random.randint(kt, (N, H, W), 0, C, dtype=jnp.int32)
    # One batch element with all-negative targets -> excluded (sum < 0).
    target = target.at[1].set(-1)

    # From __init__: nn.CrossEntropyLoss(torch.FloatTensor([1, 40])).
    class_weights = jnp.array([1.0, 40.0], dtype=jnp.float32)

    loss, count = dice_loss_forward(x, target, class_weights)
    loss, count = jax.block_until_ready((loss, count))

    ref_loss, ref_count = dice_loss_ref(x, target, class_weights)
    assert int(count) == int(ref_count), (count, ref_count)
    assert jnp.allclose(loss, ref_loss, rtol=1e-5, atol=1e-5), (loss, ref_loss)
    print("KERNEL_OK")
</pallas_src>

<mosaic_0001>
module attributes {stable_mosaic.version = 11 : i64} {
  func.func @_dice_ce_kernel(%arg0: i32, %arg1: i32, %arg2: memref<2xf32, #tpu.memory_space<smem>>, %arg3: memref<1x2x8x128xf32, #tpu.memory_space<vmem>>, %arg4: memref<1x8x128xi32, #tpu.memory_space<vmem>>, %arg5: memref<1x3x128xf32, #tpu.memory_space<vmem>>, %arg6: memref<8x128xf32, #tpu.memory_space<vmem>>, %arg7: memref<8x128xf32, #tpu.memory_space<vmem>>, %arg8: memref<8x128xf32, #tpu.memory_space<vmem>>) attributes {dimension_semantics = [#tpu.dimension_semantics<parallel>, #tpu.dimension_semantics<arbitrary>], iteration_bounds = array<i64: 4, 1>, scalar_prefetch = 0 : i64, scratch_operands = 3 : i64, tpu.core_type = #tpu.core_type<tc>, window_params = [{transform_indices = @transform_0, window_bounds = array<i64: 2>}, {transform_indices = @transform_1, window_bounds = array<i64: 1, 2, 8, 128>}, {transform_indices = @transform_2, window_bounds = array<i64: 1, 8, 128>}, {transform_indices = @transform_3, window_bounds = array<i64: 1, 3, 128>}]} {
    %c0_i32 = arith.constant 0 : i32
    %0 = arith.cmpi eq, %arg1, %c0_i32 : i32
    %1 = arith.extui %0 : i1 to i32
    %c0_i32_0 = arith.constant 0 : i32
    %2 = arith.cmpi ne, %1, %c0_i32_0 : i32
    scf.if %2 {
      %cst_28 = arith.constant 0.000000e+00 : f32
      %48 = vector.broadcast %cst_28 : f32 to vector<8x128xf32>
      %c0_29 = arith.constant 0 : index
      %c0_30 = arith.constant 0 : index
      %49 = vector.load %arg6[%c0_29, %c0_30] : memref<8x128xf32, #tpu.memory_space<vmem>>, vector<8x128xf32>
      tpu.vector_store %arg6[%c0_29, %c0_30], %48 {strides = array<i32>} : memref<8x128xf32, #tpu.memory_space<vmem>>, vector<8x128xf32>,
      %cst_31 = arith.constant 0.000000e+00 : f32
      %50 = vector.broadcast %cst_31 : f32 to vector<8x128xf32>
      %c0_32 = arith.constant 0 : index
      %c0_33 = arith.constant 0 : index
      %51 = vector.load %arg7[%c0_32, %c0_33] : memref<8x128xf32, #tpu.memory_space<vmem>>, vector<8x128xf32>
      tpu.vector_store %arg7[%c0_32, %c0_33], %50 {strides = array<i32>} : memref<8x128xf32, #tpu.memory_space<vmem>>, vector<8x128xf32>,
      %cst_34 = arith.constant 0.000000e+00 : f32
      %52 = vector.broadcast %cst_34 : f32 to vector<8x128xf32>
      %c0_35 = arith.constant 0 : index
      %c0_36 = arith.constant 0 : index
      %53 = vector.load %arg8[%c0_35, %c0_36] : memref<8x128xf32, #tpu.memory_space<vmem>>, vector<8x128xf32>
      tpu.vector_store %arg8[%c0_35, %c0_36], %52 {strides = array<i32>} : memref<8x128xf32, #tpu.memory_space<vmem>>, vector<8x128xf32>,
    } else {
    }
    %c0 = arith.constant 0 : index
    %c0_1 = arith.constant 0 : index
    %c0_2 = arith.constant 0 : index
    %c0_3 = arith.constant 0 : index
    %3 = vector.load %arg3[%c0, %c0_1, %c0_2, %c0_3] : memref<1x2x8x128xf32, #tpu.memory_space<vmem>>, vector<1x1x8x128xf32>
    %4 = vector.shape_cast %3 : vector<1x1x8x128xf32> to vector<8x128xf32>
    %c0_4 = arith.constant 0 : index
    %c1 = arith.constant 1 : index
    %c0_5 = arith.constant 0 : index
    %c0_6 = arith.constant 0 : index
    %5 = vector.load %arg3[%c0_4, %c1, %c0_5, %c0_6] : memref<1x2x8x128xf32, #tpu.memory_space<vmem>>, vector<1x1x8x128xf32>
    %6 = vector.shape_cast %5 : vector<1x1x8x128xf32> to vector<8x128xf32>
    %c0_7 = arith.constant 0 : index
    %c0_8 = arith.constant 0 : index
    %c0_9 = arith.constant 0 : index
    %7 = vector.load %arg4[%c0_7, %c0_8, %c0_9] : memref<1x8x128xi32, #tpu.memory_space<vmem>>, vector<1x8x128xi32>
    %8 = vector.shape_cast %7 : vector<1x8x128xi32> to vector<8x128xi32>
    %9 = arith.subf %6, %4 : vector<8x128xf32>
    %cst = arith.constant 5.000000e-01 : f32
    %10 = vector.broadcast %cst : f32 to vector<8x128xf32>
    %11 = arith.mulf %9, %10 : vector<8x128xf32>
    %12 = math.tanh %11 : vector<8x128xf32>
    %13 = math.exp %12 : vector<8x128xf32>
    %cst_10 = arith.constant 1.000000e+00 : f32
    %14 = vector.broadcast %cst_10 : f32 to vector<8x128xf32>
    %15 = arith.addf %14, %13 : vector<8x128xf32>
    %16 = math.log %15 : vector<8x128xf32>
    %c1_i32 = arith.constant 1 : i32
    %17 = vector.broadcast %c1_i32 : i32 to vector<8x128xi32>
    %18 = arith.cmpi eq, %8, %17 : vector<8x128xi32>
    %19 = arith.extui %18 : vector<8x128xi1> to vector<8x128xi32>
    %20 = arith.sitofp %19 : vector<8x128xi32> to vector<8x128xf32>
    %c0_i32_11 = arith.constant 0 : i32
    %21 = vector.broadcast %c0_i32_11 : i32 to vector<8x128xi32>
    %22 = arith.cmpi eq, %8, %21 : vector<8x128xi32>
    %23 = arith.extui %22 : vector<8x128xi1> to vector<8x128xi32>
    %24 = arith.sitofp %23 : vector<8x128xi32> to vector<8x128xf32>
    %c0_12 = arith.constant 0 : index
    %25 = memref.load %arg2[%c0_12] : memref<2xf32, #tpu.memory_space<smem>>
    %26 = vector.broadcast %25 : f32 to vector<8x128xf32>
    %27 = arith.mulf %26, %24 : vector<8x128xf32>
    %c1_13 = arith.constant 1 : index
    %28 = memref.load %arg2[%c1_13] : memref<2xf32, #tpu.memory_space<smem>>
    %29 = vector.broadcast %28 : f32 to vector<8x128xf32>
    %30 = arith.mulf %29, %20 : vector<8x128xf32>
    %31 = arith.addf %27, %30 : vector<8x128xf32>
    %c0_14 = arith.constant 0 : index
    %c0_15 = arith.constant 0 : index
    %32 = vector.load %arg6[%c0_14, %c0_15] : memref<8x128xf32, #tpu.memory_space<vmem>>, vector<8x128xf32>
    %33 = arith.mulf %20, %12 : vector<8x128xf32>
    %34 = arith.subf %16, %33 : vector<8x128xf32>
    %35 = arith.mulf %31, %34 : vector<8x128xf32>
    %36 = arith.addf %32, %35 : vector<8x128xf32>
    %c0_16 = arith.constant 0 : index
    %c0_17 = arith.constant 0 : index
    %37 = vector.load %arg6[%c0_16, %c0_17] : memref<8x128xf32, #tpu.memory_space<vmem>>, vector<8x128xf32>
    tpu.vector_store %arg6[%c0_16, %c0_17], %36 {strides = array<i32>} : memref<8x128xf32, #tpu.memory_space<vmem>>, vector<8x128xf32>,
    %c0_18 = arith.constant 0 : index
    %c0_19 = arith.constant 0 : index
    %38 = vector.load %arg7[%c0_18, %c0_19] : memref<8x128xf32, #tpu.memory_space<vmem>>, vector<8x128xf32>
    %39 = arith.addf %38, %31 : vector<8x128xf32>
    %c0_20 = arith.constant 0 : index
    %c0_21 = arith.constant 0 : index
    %40 = vector.load %arg7[%c0_20, %c0_21] : memref<8x128xf32, #tpu.memory_space<vmem>>, vector<8x128xf32>
    tpu.vector_store %arg7[%c0_20, %c0_21], %39 {strides = array<i32>} : memref<8x128xf32, #tpu.memory_space<vmem>>, vector<8x128xf32>,
    %c0_22 = arith.constant 0 : index
    %c0_23 = arith.constant 0 : index
    %41 = vector.load %arg8[%c0_22, %c0_23] : memref<8x128xf32, #tpu.memory_space<vmem>>, vector<8x128xf32>
    %42 = arith.sitofp %8 : vector<8x128xi32> to vector<8x128xf32>
    %43 = arith.addf %41, %42 : vector<8x128xf32>
    %c0_24 = arith.constant 0 : index
    %c0_25 = arith.constant 0 : index
    %44 = vector.load %arg8[%c0_24, %c0_25] : memref<8x128xf32, #tpu.memory_space<vmem>>, vector<8x128xf32>
    tpu.vector_store %arg8[%c0_24, %c0_25], %43 {strides = array<i32>} : memref<8x128xf32, #tpu.memory_space<vmem>>, vector<8x128xf32>,
    %c0_i32_26 = arith.constant 0 : i32
    %45 = arith.cmpi eq, %arg1, %c0_i32_26 : i32
    %46 = arith.extui %45 : i1 to i32
    %c0_i32_27 = arith.constant 0 : i32
    %47 = arith.cmpi ne, %46, %c0_i32_27 : i32
    scf.if %47 {
      %c0_28 = arith.constant 0 : index
      %c0_29 = arith.constant 0 : index
      %48 = vector.load %arg6[%c0_28, %c0_29] : memref<8x128xf32, #tpu.memory_space<vmem>>, vector<8x128xf32>
      %cst_30 = arith.constant dense<0.000000e+00> : vector<128xf32>
      %49 = vector.multi_reduction <add>, %48, %cst_30 [0] : vector<8x128xf32> to vector<128xf32>
      %50 = vector.shape_cast %49 : vector<128xf32> to vector<1x128xf32>
      %c0_31 = arith.constant 0 : index
      %c0_32 = arith.constant 0 : index
      %c0_33 = arith.constant 0 : index
      %51 = vector.load %arg5[%c0_31, %c0_32, %c0_33] : memref<1x3x128xf32, #tpu.memory_space<vmem>>, vector<1x1x128xf32>
      %52 = vector.shape_cast %51 : vector<1x1x128xf32> to vector<1x128xf32>
      %53 = vector.shape_cast %50 : vector<1x128xf32> to vector<1x1x128xf32>
      tpu.vector_store %arg5[%c0_31, %c0_32, %c0_33], %53 {strides = array<i32>} : memref<1x3x128xf32, #tpu.memory_space<vmem>>, vector<1x1x128xf32>,
      %c0_34 = arith.constant 0 : index
      %c0_35 = arith.constant 0 : index
      %54 = vector.load %arg7[%c0_34, %c0_35] : memref<8x128xf32, #tpu.memory_space<vmem>>, vector<8x128xf32>
      %cst_36 = arith.constant dense<0.000000e+00> : vector<128xf32>
      %55 = vector.multi_reduction <add>, %54, %cst_36 [0] : vector<8x128xf32> to vector<128xf32>
      %56 = vector.shape_cast %55 : vector<128xf32> to vector<1x128xf32>
      %c0_37 = arith.constant 0 : index
      %c1_38 = arith.constant 1 : index
      %c0_39 = arith.constant 0 : index
      %57 = vector.load %arg5[%c0_37, %c1_38, %c0_39] : memref<1x3x128xf32, #tpu.memory_space<vmem>>, vector<1x1x128xf32>
      %58 = vector.shape_cast %57 : vector<1x1x128xf32> to vector<1x128xf32>
      %59 = vector.shape_cast %56 : vector<1x128xf32> to vector<1x1x128xf32>
      tpu.vector_store %arg5[%c0_37, %c1_38, %c0_39], %59 {strides = array<i32>} : memref<1x3x128xf32, #tpu.memory_space<vmem>>, vector<1x1x128xf32>,
      %c0_40 = arith.constant 0 : index
      %c0_41 = arith.constant 0 : index
      %60 = vector.load %arg8[%c0_40, %c0_41] : memref<8x128xf32, #tpu.memory_space<vmem>>, vector<8x128xf32>
      %cst_42 = arith.constant dense<0.000000e+00> : vector<128xf32>
      %61 = vector.multi_reduction <add>, %60, %cst_42 [0] : vector<8x128xf32> to vector<128xf32>
      %62 = vector.shape_cast %61 : vector<128xf32> to vector<1x128xf32>
      %c0_43 = arith.constant 0 : index
      %c2 = arith.constant 2 : index
      %c0_44 = arith.constant 0 : index
      %63 = vector.load %arg5[%c0_43, %c2, %c0_44] : memref<1x3x128xf32, #tpu.memory_space<vmem>>, vector<1x1x128xf32>
      %64 = vector.shape_cast %63 : vector<1x1x128xf32> to vector<1x128xf32>
      %65 = vector.shape_cast %62 : vector<1x128xf32> to vector<1x1x128xf32>
      tpu.vector_store %arg5[%c0_43, %c2, %c0_44], %65 {strides = array<i32>} : memref<1x3x128xf32, #tpu.memory_space<vmem>>, vector<1x1x128xf32>,
    } else {
    }
    return
  }
  func.func @transform_0(%arg0: i32, %arg1: i32) -> i32 {
    %c0_i32 = arith.constant 0 : i32
    %c0_i32_0 = arith.constant 0 : i32
    return %c0_i32 : i32
  }
  func.func @transform_1(%arg0: i32, %arg1: i32) -> (i32, i32, i32, i32) {
    %c0_i32 = arith.constant 0 : i32
    %c0_i32_0 = arith.constant 0 : i32
    %c0_i32_1 = arith.constant 0 : i32
    return %arg0, %c0_i32, %arg1, %c0_i32_0 : i32, i32, i32, i32
  }
  func.func @transform_2(%arg0: i32, %arg1: i32) -> (i32, i32, i32) {
    %c0_i32 = arith.constant 0 : i32
    %c0_i32_0 = arith.constant 0 : i32
    return %arg0, %arg1, %c0_i32 : i32, i32, i32
  }
  func.func @transform_3(%arg0: i32, %arg1: i32) -> (i32, i32, i32) {
    %c0_i32 = arith.constant 0 : i32
    %c0_i32_0 = arith.constant 0 : i32
    %c0_i32_1 = arith.constant 0 : i32
    return %arg0, %c0_i32, %c0_i32_0 : i32, i32, i32
  }
}

</mosaic_0001>

<llo_original>
// kernel: tpu_custom_call.1
$region0: #{tpu_custom_call.1}
  #allocation0 [shape = 'u32[]', space=smem, size = 0x4, offset = 0x4, fixed_abs, tag = 'smem constant byte address 0x4 - core index']
  #allocation1 [shape = 'u32[144,128]{1,0:T(1,128)}', space=vmem, size = 0x12000, scoped, tag = 'internal scratch']
  #allocation2 [shape = 'f32[8,128]{1,0:T(8,128)}', space=vmem, size = 0x1000, scoped, tag = 'scratch operand']
  #allocation3 [shape = 'f32[8,128]{1,0:T(8,128)}', space=vmem, size = 0x1000, scoped, tag = 'scratch operand']
  #allocation4 [shape = 'f32[8,128]{1,0:T(8,128)}', space=vmem, size = 0x1000, scoped, tag = 'scratch operand']
  %s0 = inlined_call_operand.hbm [shape: f32[2], index: 0, kind: input, shape index: {}]
  %s1 = inlined_call_operand.hbm [shape: f32[4,2,8,128], index: 1, kind: input, shape index: {}]
  %s2 = inlined_call_operand.hbm [shape: s32[4,8,128], index: 2, kind: input, shape index: {}]
  %s3 = inlined_call_operand.vmem [shape: f32[4,3,128], index: 3, kind: output, shape index: {}]
  %s4 = sld [smem:[#allocation0]]
  $region65: #{tpu_custom_call.1} parent=0
    _
  %s6 = ssub.s32 1, %s4
  %s7 = scalar_select 0, %s6, %s4
  $region1: #{tpu_custom_call.1} parent=0
    #allocation5 [shape = 'u8[512]{0}', space=smem, size = 0x200, scoped, tag = 'input window, operand 0, single buffered']
    #allocation6 [shape = 's32[2]{0}', space=sflag, size = 0x8, scoped, tag = 'scoped memory for tpu_custom_call.1']
    #allocation7 [shape = 's32[2]{0}', space=sflag, size = 0x8, scoped, tag = 'scoped memory for tpu_custom_call.1']
    #allocation8 [shape = 'u8[16384]{0}', space=vmem, size = 0x4000, scoped, tag = 'input window, operand 1']
    #allocation9 [shape = 'u8[8192]{0}', space=vmem, size = 0x2000, scoped, tag = 'input window, operand 2']
    #allocation10 [shape = 's32[2]{0}', space=sflag, size = 0x8, scoped, tag = 'scoped memory for tpu_custom_call.1']
    %8 = vsyncpa [#allocation7], 0
    %9 = vsyncpa [#allocation6], 0
    %s10 = scalar_lea.sflag [#allocation6], 1
    %11 = vsyncpa %s10, 0
    %12 = vsyncpa [#allocation10], 0
    %s13 = scalar_lea.sflag [#allocation10], 1
    %14 = vsyncpa %s13, 0
    loop: start=0, step=1, limit=6
    $region2: #{tpu_custom_call.1} parent=1 // loop_pre_header
      _
    $region3: #{tpu_custom_call.1} parent=1 // loop_header
      %s16 = sphi 0, %s20
      %p17 = scmp.ge.s32.totalorder %s16, 6
      %s23 = sphi 0, %s35
      %s24 = sphi 0, %s31
      %s25 = sphi 0, %s23
      %s26 = sphi 0, %s24
      %s27 = sphi 0, %s25
      %s28 = sphi 0, %s26
      %s36 = sphi 0, %s36
      %s38 = sphi 0, %s36
      %s39 = sphi 0, %s38
      %s53 = sphi 0, %s39
      %s61 = sphi 0, %s63
      %s64 = sphi 0, %s61
      %s65 = sphi 0, %s64
      %s81 = sphi 0, %s65
      %s89 = sphi 0, %s91
      %s92 = sphi 0, %s89
      %s93 = sphi 0, %s92
      %s109 = sphi 0, %s93
      %s115 = sphi 0, %s117
      %s118 = sphi 0, %s115
      %s119 = sphi 0, %s118
      %s135 = sphi 0, %s119
    $region4: #{tpu_custom_call.1} parent=1 // loop_header_branch
      %19 = sbr.rel (%p17) target = $region8
    $region5: #{tpu_custom_call.1} parent=1 // loop_body
      %s21 = ssub.s32 %s16, 1
      %s22 = ssub.s32 %s16, 2
      %s29 = sadd.s32 1, %s24
      %p30 = scmp.ge.s32.totalorder %s29, 1
      %s31 = scalar_select %p30, 0, %s29
      %s32 = sadd.s32 1, %s23
      %s33 = scalar_select %p30, %s32, %s23
      %p34 = scmp.ge.s32.totalorder %s33, 4
      %s35 = scalar_select %p34, 0, %s33
      %s37 = sadd.s32 %s36, 1
      %p40 = scmp.eq.s32.totalorder %s16, 3
      %p41 = scmp.ne.s32.totalorder %s36, %s38
      %p42 = scmp.eq.s32.totalorder %s16, 0
      %p43 = por %p41, %p42
      %p44 = scmp.ne.s32.totalorder %s36, %s38
      %p45 = scmp.eq.s32.totalorder %s21, 3
      %p46 = por %p44, %p45
      %p47 = scmp.ne.s32.totalorder %s38, %s39
      %p48 = scmp.eq.s32.totalorder %s21, 0
      %p49 = por %p47, %p48
      %p50 = scmp.ne.s32.totalorder %s38, %s39
      %p51 = scmp.eq.s32.totalorder %s22, 3
      %p52 = por %p50, %p51
      %p54 = scmp.ne.s32.totalorder %s39, %s53
      %p55 = scmp.eq.s32.totalorder %s22, 0
      %p56 = por %p54, %p55
      %s57 = ssub.s32 %s23, %s35
      %s58 = ssub.s32 %s24, %s31
      %s59 = sor.u32 %s57, %s58
      %p60 = scmp.eq.s32.totalorder %s59, 0
      %s62 = sadd.s32 %s61, 1
      %s63 = scalar_select %p60, %s61, %s62
      %p66 = pneg %p60
      %p67 = scmp.eq.s32.totalorder %s16, 3
      %p68 = por %p66, %p67
      %p69 = scmp.ne.s32.totalorder %s61, %s64
      %p70 = scmp.eq.s32.totalorder %s16, 0
      %p71 = por %p69, %p70
      %p72 = scmp.ne.s32.totalorder %s61, %s64
      %p73 = scmp.eq.s32.totalorder %s21, 3
      %p74 = por %p72, %p73
      %p75 = scmp.ne.s32.totalorder %s64, %s65
      %p76 = scmp.eq.s32.totalorder %s21, 0
      %p77 = por %p75, %p76
      %p78 = scmp.ne.s32.totalorder %s64, %s65
      %p79 = scmp.eq.s32.totalorder %s22, 3
      %p80 = por %p78, %p79
      %p82 = scmp.ne.s32.totalorder %s65, %s81
      %p83 = scmp.eq.s32.totalorder %s22, 0
      %p84 = por %p82, %p83
      %s85 = ssub.s32 %s23, %s35
      %s86 = ssub.s32 %s24, %s31
      %s87 = sor.u32 %s85, %s86
      %p88 = scmp.eq.s32.totalorder %s87, 0
      %s90 = sadd.s32 %s89, 1
      %s91 = scalar_select %p88, %s89, %s90
      %p94 = pneg %p88
      %p95 = scmp.eq.s32.totalorder %s16, 3
      %p96 = por %p94, %p95
      %p97 = scmp.ne.s32.totalorder %s89, %s92
      %p98 = scmp.eq.s32.totalorder %s16, 0
      %p99 = por %p97, %p98
      %p100 = scmp.ne.s32.totalorder %s89, %s92
      %p101 = scmp.eq.s32.totalorder %s21, 3
      %p102 = por %p100, %p101
      %p103 = scmp.ne.s32.totalorder %s92, %s93
      %p104 = scmp.eq.s32.totalorder %s21, 0
      %p105 = por %p103, %p104
      %p106 = scmp.ne.s32.totalorder %s92, %s93
      %p107 = scmp.eq.s32.totalorder %s22, 3
      %p108 = por %p106, %p107
      %p110 = scmp.ne.s32.totalorder %s93, %s109
      %p111 = scmp.eq.s32.totalorder %s22, 0
      %p112 = por %p110, %p111
      %s113 = ssub.s32 %s23, %s35
      %p114 = scmp.eq.s32.totalorder %s113, 0
      %s116 = sadd.s32 %s115, 1
      %s117 = scalar_select %p114, %s115, %s116
      %p120 = pneg %p114
      %p121 = scmp.eq.s32.totalorder %s16, 3
      %p122 = por %p120, %p121
      %p123 = scmp.ne.s32.totalorder %s115, %s118
      %p124 = scmp.eq.s32.totalorder %s16, 0
      %p125 = por %p123, %p124
      %p126 = scmp.ne.s32.totalorder %s115, %s118
      %p127 = scmp.eq.s32.totalorder %s21, 3
      %p128 = por %p126, %p127
      %p129 = scmp.ne.s32.totalorder %s118, %s119
      %p130 = scmp.eq.s32.totalorder %s21, 0
      %p131 = por %p129, %p130
      %p132 = scmp.ne.s32.totalorder %s118, %s119
      %p133 = scmp.eq.s32.totalorder %s22, 3
      %p134 = por %p132, %p133
      %p136 = scmp.ne.s32.totalorder %s119, %s135
      %p137 = scmp.eq.s32.totalorder %s22, 0
      %p138 = por %p136, %p137
      %p139 = scmp.le.s32.totalorder 1, %s16
      %p140 = scmp.lt.s32.totalorder %s16, 5
      %p141 = pnand %p139, %p140
      %p142 = pneg %p141
      // Predicated region
      $region9: #{tpu_custom_call.1} parent=5 // pred_check
        _
      $region10: #{tpu_custom_call.1} parent=5 // pred_check_branch
        %144 = sbr.rel (%p141) target = $region12
      $region11: #{tpu_custom_call.1} parent=5 // pred_region
        %s145 = ssub.s32 %s16, 1
        // Predicated region
        $region13: #{tpu_custom_call.1} parent=11 // pred_check
          %p146 = pneg %p49
        $region14: #{tpu_custom_call.1} parent=11 // pred_check_branch
          %148 = sbr.rel (%p146) target = $region16
        $region15: #{tpu_custom_call.1} parent=11 // pred_region
          %s150 = ssub.s32 16, 16
          %151 = vsyncadd [#allocation7], %s150
          %154 = dma.hbm_to_smem %s0, 16, [#allocation5], [#allocation7]
        $region16: #{tpu_custom_call.1} parent=11 // pred_fallthru
          _
      $region12: #{tpu_custom_call.1} parent=5 // pred_fallthru
        _
      %p155 = scmp.lt.s32.totalorder %s16, 4
      // Predicated region
      $region17: #{tpu_custom_call.1} parent=5 // pred_check
        %p156 = pneg %p155
      $region18: #{tpu_custom_call.1} parent=5 // pred_check_branch
        %158 = sbr.rel (%p156) target = $region20
      $region19: #{tpu_custom_call.1} parent=5 // pred_region
        // Predicated region
        $region21: #{tpu_custom_call.1} parent=19 // pred_check
          %p159 = pneg %p71
        $region22: #{tpu_custom_call.1} parent=19 // pred_check_branch
          %161 = sbr.rel (%p159) target = $region24
        $region23: #{tpu_custom_call.1} parent=19 // pred_region
          %s162 = sand.u32 %s61, 1
          %s163 = scalar_lea.sflag [#allocation6], %s162
          %s164 = sand.u32 %s61, 1
          %s165 = smul.addr %s164, 16
          %s166 = scalar_lea.vmem [#allocation8], %s165
          %s168 = ssub.s32 256, 256
          %169 = vsyncadd %s163, %s168
          %s170 = smul.addr %s23, 2
          %s171 = sadd.s32 %s24, %s170
          %s172 = smul.addr %s171, 128
          %s173 = scalar_lea.hbm %s1, %s172
          %s174 = sshll.u32 %s166, 4
          %s175 = int_to_ptr.vmem [resolvable:$true] %s174
          %180 = dma.hbm_to_vmem [thread:$0]  %s173, 256, %s175, %s163, 128, 128, 8
        $region24: #{tpu_custom_call.1} parent=19 // pred_fallthru
          _
        // Predicated region
        $region25: #{tpu_custom_call.1} parent=19 // pred_check
          %p181 = pneg %p99
        $region26: #{tpu_custom_call.1} parent=19 // pred_check_branch
          %183 = sbr.rel (%p181) target = $region28
        $region27: #{tpu_custom_call.1} parent=19 // pred_region
          %s184 = sand.u32 %s89, 1
          %s185 = scalar_lea.sflag [#allocation10], %s184
          %s186 = sand.u32 %s89, 1
          %s187 = smul.addr %s186, 8
          %s188 = scalar_lea.vmem [#allocation9], %s187
          %s190 = ssub.s32 128, 128
          %191 = vsyncadd %s185, %s190
          %s192 = sadd.s32 %s24, %s23
          %s193 = smul.addr %s192, 128
          %s194 = scalar_lea.hbm %s2, %s193
          %s196 = sshll.u32 %s188, 4
          %s197 = int_to_ptr.vmem [resolvable:$true] %s196
          %199 = dma.hbm_to_vmem [thread:$0]  %s194, 128, %s197, %s185
        $region28: #{tpu_custom_call.1} parent=19 // pred_fallthru
          _
      $region20: #{tpu_custom_call.1} parent=5 // pred_fallthru
        _
      %p200 = scmp.le.s32.totalorder 1, %s16
      %p201 = scmp.lt.s32.totalorder %s16, 5
      %p202 = pnand %p200, %p201
      %p203 = pneg %p202
      // Predicated region
      $region29: #{tpu_custom_call.1} parent=5 // pred_check
        _
      $region30: #{tpu_custom_call.1} parent=5 // pred_check_branch
        %205 = sbr.rel (%p202) target = $region32
      $region31: #{tpu_custom_call.1} parent=5 // pred_region
        %s206 = ssub.s32 %s16, 1
        // Predicated region
        $region33: #{tpu_custom_call.1} parent=31 // pred_check
          %p207 = pneg %p49
        $region34: #{tpu_custom_call.1} parent=31 // pred_check_branch
          %209 = sbr.rel (%p207) target = $region36
        $region35: #{tpu_custom_call.1} parent=31 // pred_region
          %210 = dma.done [#allocation7], 16
        $region36: #{tpu_custom_call.1} parent=31 // pred_fallthru
          _
        %s211 = sand.u32 %s64, 1
        %s212 = scalar_lea.sflag [#allocation6], %s211
        %s213 = sand.u32 %s64, 1
        %s214 = smul.addr %s213, 16
        %s215 = scalar_lea.vmem [#allocation8], %s214
        // Predicated region
        $region37: #{tpu_custom_call.1} parent=31 // pred_check
          %p216 = pneg %p77
        $region38: #{tpu_custom_call.1} parent=31 // pred_check_branch
          %218 = sbr.rel (%p216) target = $region40
        $region39: #{tpu_custom_call.1} parent=31 // pred_region
          %219 = dma.done %s212, 256
        $region40: #{tpu_custom_call.1} parent=31 // pred_fallthru
          _
        %s220 = sand.u32 %s92, 1
        %s221 = scalar_lea.sflag [#allocation10], %s220
        %s222 = sand.u32 %s92, 1
        %s223 = smul.addr %s222, 8
        %s224 = scalar_lea.vmem [#allocation9], %s223
        // Predicated region
        $region41: #{tpu_custom_call.1} parent=31 // pred_check
          %p225 = pneg %p105
        $region42: #{tpu_custom_call.1} parent=31 // pred_check_branch
          %227 = sbr.rel (%p225) target = $region44
        $region43: #{tpu_custom_call.1} parent=31 // pred_region
          %228 = dma.done %s221, 128
        $region44: #{tpu_custom_call.1} parent=31 // pred_fallthru
          _
        %229 = sfence
        %p230 = pneg %p49
        %p231 = pneg %p46
        %s232 = sand.u32 %s64, 1
        %s233 = scalar_lea.sflag [#allocation6], %s232
        %s234 = sand.u32 %s64, 1
        %s235 = smul.addr %s234, 16
        %s236 = scalar_lea.vmem [#allocation8], %s235
        %p237 = pneg %p77
        %p238 = pneg %p74
        %s239 = sand.u32 %s92, 1
        %s240 = scalar_lea.sflag [#allocation10], %s239
        %s241 = sand.u32 %s92, 1
        %s242 = smul.addr %s241, 8
        %s243 = scalar_lea.vmem [#allocation9], %s242
        %p244 = pneg %p105
        %p245 = pneg %p102
        %p246 = pneg %p131
        %p247 = pneg %p128
        %p248 = scmp.lt.s32.totalorder %s25, 3
        %s249 = scalar_select %p248, %s25, 3
        %s250 = smul.addr %s249, 4
        %s251 = scalar_lea.vmem %s3, %s250
        %p252 = scmp.lt.s32.totalorder %s25, 3
        %s253 = scalar_select %p252, %s25, 3
        %s254 = smul.addr %s253, 4
        %s255 = scalar_lea.vmem %s3, %s254
        %p256 = scmp.eq.s32.totalorder %s26, 0
        // Predicated region
        $region45: #{tpu_custom_call.1} parent=31 // pred_check
          %p257 = pneg %p256
        $region46: #{tpu_custom_call.1} parent=31 // pred_check_branch
          %259 = sbr.rel (%p257) target = $region48
        $region47: #{tpu_custom_call.1} parent=31 // pred_region
          %260 = vst [vmem:[#allocation2] sm:$0xff] 0.0
          %261 = vst [vmem:[#allocation3] sm:$0xff] 0.0
          %262 = vst [vmem:[#allocation4] sm:$0xff] 0.0
        $region48: #{tpu_custom_call.1} parent=31 // pred_fallthru
          _
        %v263 = vld [vmem:[%s215] sm:$0xff]
        %s264 = scalar_lea.vmem %s215, 8 [#allocation8]
        %v265 = vld [vmem:[%s264] sm:$0xff]
        %v266 = vld [vmem:[%s224] sm:$0xff]
        %v267 = vsub.f32 %v265, %v263
        %v268 = vmul.f32 %v267, 0.5
        %v269 = vtanh.pop %v268
        %v270 = vmul.f32 %v269, 1.442695
        %v271 = vpow.pop %v270
        %v272 = vadd.f32 %v271, 1.0
        %v273 = vlog2.pop %v272
        %v274 = vmul.f32 %v273, 0.6931472
        %vm275 = vcmp.eq.s32.totalorder %v266, 1
        %v276 = vsel %vm275, 1, 0
        %v277 = vcvt.s32.f32 %v276
        %vm278 = vcmp.eq.s32.totalorder %v266, 0
        %v279 = vsel %vm278, 1, 0
        %v280 = vcvt.s32.f32 %v279
        %s281 = sld [smem:[#allocation5]]
        %v282 = vstv %s281
        %v283 = vmul.f32 %v282, %v280
        %s284 = sld [smem:[#allocation5 + $0x1]]
        %v285 = vstv %s284
        %v286 = vmul.f32 %v285, %v277
        %v287 = vadd.f32 %v283, %v286
        %v288 = vld [vmem:[#allocation2] sm:$0xff]
        %v289 = vmul.f32 %v277, %v269
        %v290 = vsub.f32 %v274, %v289
        %v291 = vmul.f32 %v287, %v290
        %v292 = vadd.f32 %v288, %v291
        %293 = vst [vmem:[#allocation2] sm:$0xff] %v292
        %v294 = vld [vmem:[#allocation3] sm:$0xff]
        %v295 = vadd.f32 %v294, %v287
        %296 = vst [vmem:[#allocation3] sm:$0xff] %v295
        %v297 = vld [vmem:[#allocation4] sm:$0xff]
        %v298 = vcvt.s32.f32 %v266
        %v299 = vadd.f32 %v297, %v298
        %300 = vst [vmem:[#allocation4] sm:$0xff] %v299
        // Predicated region
        $region49: #{tpu_custom_call.1} parent=31 // pred_check
          %p301 = pneg %p256
        $region50: #{tpu_custom_call.1} parent=31 // pred_check_branch
          %303 = sbr.rel (%p301) target = $region52
        $region51: #{tpu_custom_call.1} parent=31 // pred_region
          %v304 = vld [vmem:[#allocation2] sm:$0xff]
          %v305 = vrot.slane %v304, 4
          %v306 = vadd.f32 %v304, %v305
          %v307 = vrot.slane %v306, 2
          %v308 = vadd.f32 %v306, %v307
          %v309 = vrot.slane %v308, 1
          %v310 = vadd.f32 %v308, %v309
          %311 = vst [vmem:[%s255] sm:$0x1] %v310
          %v312 = vld [vmem:[#allocation3] sm:$0xff]
          %v313 = vrot.slane %v312, 4
          %v314 = vadd.f32 %v312, %v313
          %v315 = vrot.slane %v314, 2
          %v316 = vadd.f32 %v314, %v315
          %v317 = vrot.slane %v316, 1
          %v318 = vadd.f32 %v316, %v317
          %319 = vst [vmem:[%s255 + $0x1] sm:$0x1] %v318
          %v320 = vld [vmem:[#allocation4] sm:$0xff]
          %v321 = vrot.slane %v320, 4
          %v322 = vadd.f32 %v320, %v321
          %v323 = vrot.slane %v322, 2
          %v324 = vadd.f32 %v322, %v323
          %v325 = vrot.slane %v324, 1
          %v326 = vadd.f32 %v324, %v325
          %327 = vst [vmem:[%s255 + $0x2] sm:$0x1] %v326
        $region52: #{tpu_custom_call.1} parent=31 // pred_fallthru
          _
        %p328 = scmp.lt.s32.totalorder %s25, 3
        %s329 = scalar_select %p328, %s25, 3
        %s330 = smul.addr %s329, 4
        %s331 = scalar_lea.vmem %s3, %s330
        // Predicated region
        $region53: #{tpu_custom_call.1} parent=31 // pred_check
          %p332 = pneg %p128
        $region54: #{tpu_custom_call.1} parent=31 // pred_check_branch
          %334 = sbr.rel (%p332) target = $region56
        $region55: #{tpu_custom_call.1} parent=31 // pred_region
          _
        $region56: #{tpu_custom_call.1} parent=31 // pred_fallthru
          _
      $region32: #{tpu_custom_call.1} parent=5 // pred_fallthru
        _
      %p335 = scmp.le.s32.totalorder 2, %s16
      // Predicated region
      $region57: #{tpu_custom_call.1} parent=5 // pred_check
        %p336 = pneg %p335
      $region58: #{tpu_custom_call.1} parent=5 // pred_check_branch
        %338 = sbr.rel (%p336) target = $region60
      $region59: #{tpu_custom_call.1} parent=5 // pred_region
        %s339 = ssub.s32 %s16, 2
        // Predicated region
        $region61: #{tpu_custom_call.1} parent=59 // pred_check
          %p340 = pneg %p134
        $region62: #{tpu_custom_call.1} parent=59 // pred_check_branch
          %342 = sbr.rel (%p340) target = $region64
        $region63: #{tpu_custom_call.1} parent=59 // pred_region
          %p343 = scmp.lt.s32.totalorder %s27, 3
          %s344 = scalar_select %p343, %s27, 3
          %s345 = smul.addr %s344, 4
          %s346 = scalar_lea.vmem %s3, %s345
        $region64: #{tpu_custom_call.1} parent=59 // pred_fallthru
          _
      $region60: #{tpu_custom_call.1} parent=5 // pred_fallthru
        _
    $region6: #{tpu_custom_call.1} parent=1 // loop_footer
      %s20 = sadd.s32 1, %s16
    $region7: #{tpu_custom_call.1} parent=1 // loop_footer_branch
      %15 = sbr.rel target = $region3
    $region8: #{tpu_custom_call.1} parent=1 // loop_exit
      _
    %347 = vsyncpa [#allocation6], 1
    %s348 = scalar_lea.sflag [#allocation6], 1
    %349 = vsyncpa %s348, 1
    %350 = vsyncpa [#allocation10], 1
    %s351 = scalar_lea.sflag [#allocation10], 1
    %352 = vsyncpa %s351, 1
    %353 = vsyncpa [#allocation7], 1
    %s354 = scalar_lea.sflag [#allocation7], 1
    %355 = vsyncpa %s354, 1

</llo_original>
